<compile_context>
chip_gen: v7x
topology: tpu7x:2x2x1
jax: 0.10.0
libtpu: 0.0.40
codegen_flags: <defaults>
</compile_context>

<pallas_src>
import jax
import jax.numpy as jnp
from jax import lax
from jax.experimental import pallas as pl
from jax.experimental.pallas import tpu as pltpu

D_MODEL = 512
LN_EPS = 1e-5  # PyTorch nn.LayerNorm default


def _fuse_kernel(x_ref, hl_ref, ll_ref, p_ref, b_ref, out1_ref, out2_ref):
    # Load the (TM, D) tiles; compute in f32 (v5e VPU has no bf16 ALUs).
    x = x_ref[...].astype(jnp.float32)
    hl = hl_ref[...].astype(jnp.float32)
    ll = ll_ref[...].astype(jnp.float32)

    # Packed parameters: row 0 = gamma, 1 = beta, 2 = w_ll, 3 = w_hl.
    gamma = p_ref[0:1, :]
    beta = p_ref[1:2, :]
    w_ll = p_ref[2:3, :]
    w_hl = p_ref[3:4, :]
    b_ll = b_ref[0]           # scalar from SMEM
    b_hl = b_ref[1]

    # --- LayerNorm over last dim (biased variance, like torch.nn.LayerNorm) ---
    mu = jnp.mean(x, axis=-1, keepdims=True)
    xc = x - mu
    var = jnp.mean(xc * xc, axis=-1, keepdims=True)
    inv = lax.rsqrt(var + LN_EPS)
    xn = xc * inv * gamma + beta

    # --- ll branch: gate = Linear(512->1)(ll) is a per-row scalar, so
    #     sum(ll * gate) == gate * sum(ll)  (saves a full-width multiply) ---
    s_ll = jnp.sum(ll * w_ll, axis=-1, keepdims=True) + b_ll   # (TM, 1)
    x_ll = s_ll * jnp.sum(ll, axis=-1, keepdims=True)          # (TM, 1)

    # --- hl branch ---
    s_hl = jnp.sum(hl * w_hl, axis=-1, keepdims=True) + b_hl   # (TM, 1)
    x_hl = s_hl * jnp.sum(hl, axis=-1, keepdims=True)          # (TM, 1)

    out1_ref[...] = (xn + x_ll).astype(out1_ref.dtype)
    out2_ref[...] = x_hl.astype(out2_ref.dtype)


def multi_level_fuse(x, hl, ll, params, *, tile_rows=512):
    """x, hl, ll: (B, S, D_MODEL). Returns (LayerNorm(x) + x_ll, x_hl)."""
    B, S, D = x.shape
    assert D == D_MODEL and hl.shape == x.shape and ll.shape == x.shape
    N = B * S

    x2 = x.reshape(N, D)
    hl2 = hl.reshape(N, D)
    ll2 = ll.reshape(N, D)

    # Tile size: multiple of 8 sublanes, never larger than the (padded) row
    # count.  512 rows f32 => ~8 MiB double-buffered working set (fits the
    # default scoped VMEM on v5e/v6e/v7x).
    tr = min(max(int(tile_rows), 8), ((N + 7) // 8) * 8)
    tr = ((tr + 7) // 8) * 8
    n_tiles = (N + tr - 1) // tr
    n_pad = n_tiles * tr
    if n_pad != N:
        pad = ((0, n_pad - N), (0, 0))
        x2 = jnp.pad(x2, pad)
        hl2 = jnp.pad(hl2, pad)
        ll2 = jnp.pad(ll2, pad)

    # Consolidated parameters: one (4, D) VMEM buffer + one (2,) SMEM buffer.
    pmat = jnp.stack(
        [params["gamma"].reshape(D), params["beta"].reshape(D),
         params["w_ll"].reshape(D), params["w_hl"].reshape(D)]
    ).astype(jnp.float32)                                       # (4, D)
    bias = jnp.concatenate(
        [params["b_ll"].reshape(1), params["b_hl"].reshape(1)]
    ).astype(jnp.float32)                                       # (2,)

    row_spec = pl.BlockSpec((tr, D), lambda i: (i, 0))
    param_spec = pl.BlockSpec((4, D), lambda i: (0, 0))
    bias_spec = pl.BlockSpec(memory_space=pltpu.MemorySpace.SMEM)
    out2_spec = pl.BlockSpec((tr, 1), lambda i: (i, 0))

    out1, out2 = pl.pallas_call(
        _fuse_kernel,
        out_shape=(
            jax.ShapeDtypeStruct((n_pad, D), x.dtype),
            jax.ShapeDtypeStruct((n_pad, 1), x.dtype),
        ),
        grid_spec=pltpu.PrefetchScalarGridSpec(
            num_scalar_prefetch=0,
            grid=(n_tiles,),
            in_specs=[row_spec, row_spec, row_spec, param_spec, bias_spec],
            out_specs=[row_spec, out2_spec],
        ),
        compiler_params=pltpu.CompilerParams(
            dimension_semantics=("parallel",)),
    )(x2, hl2, ll2, pmat, bias)

    if n_pad != N:
        out1 = out1[:N]
        out2 = out2[:N]
    return out1.reshape(B, S, D), out2.reshape(B, S, 1)


def _reference(x, hl, ll, params):
    """Pure-JAX reference mirroring the PyTorch forward."""
    x = x.astype(jnp.float32)
    hl = hl.astype(jnp.float32)
    ll = ll.astype(jnp.float32)
    mu = jnp.mean(x, -1, keepdims=True)
    var = jnp.mean((x - mu) ** 2, -1, keepdims=True)
    xn = (x - mu) / jnp.sqrt(var + LN_EPS) * params["gamma"] + params["beta"]
    s_ll = ll @ params["w_ll"][:, None] + params["b_ll"]
    x_ll = jnp.sum(ll * s_ll, -1, keepdims=True)
    s_hl = hl @ params["w_hl"][:, None] + params["b_hl"]
    x_hl = jnp.sum(hl * s_hl, -1, keepdims=True)
    return xn + x_ll, x_hl


if __name__ == "__main__":
    key = jax.random.PRNGKey(0)
    D = D_MODEL
    kx, khl, kll, kg, kb, kwh, kbh, kwl, kbl = jax.random.split(key, 9)

    # Deterministic synthetic parameter init (shapes match the PyTorch module).
    bound = 1.0 / (D ** 0.5)
    params = {
        "gamma": 1.0 + 0.01 * jax.random.normal(kg, (D,), jnp.float32),  # LN weight
        "beta": 0.01 * jax.random.normal(kb, (D,), jnp.float32),         # LN bias
        "w_hl": jax.random.uniform(kwh, (D,), jnp.float32, -bound, bound),  # hl_weight
        "b_hl": jax.random.uniform(kbh, (1,), jnp.float32, -bound, bound),
        "w_ll": jax.random.uniform(kwl, (D,), jnp.float32, -bound, bound),  # ll_weight
        "b_ll": jax.random.uniform(kbl, (1,), jnp.float32, -bound, bound),
    }

    ok = True
    # Case 1: small shape consistent with the module (B=2, S=8, D=512).
    # Case 2: row count not a multiple of the tile -> exercises tail padding.
    for (B, S, tr) in [(2, 8, 512), (3, 5, 8)]:
        kcx, kchl, kcll = jax.random.split(jax.random.fold_in(key, B * 100 + S), 3)
        x = jax.random.normal(kcx, (B, S, D), jnp.float32)
        hl = jax.random.normal(kchl, (B, S, D), jnp.float32)
        ll = jax.random.normal(kcll, (B, S, D), jnp.float32)

        out1, out2 = multi_level_fuse(x, hl, ll, params, tile_rows=tr)
        jax.block_until_ready((out1, out2))

        ref1, ref2 = _reference(x, hl, ll, params)
        ok &= out1.shape == (B, S, D) and out2.shape == (B, S, 1)
        ok &= bool(jnp.allclose(out1, ref1, atol=1e-4, rtol=1e-4))
        ok &= bool(jnp.allclose(out2, ref2, atol=1e-4, rtol=1e-4))

    assert ok
    print("KERNEL_OK")
</pallas_src>

<mosaic_0001>
module attributes {stable_mosaic.version = 11 : i64} {
  func.func @_fuse_kernel(%arg0: i32, %arg1: memref<16x512xf32, #tpu.memory_space<vmem>>, %arg2: memref<16x512xf32, #tpu.memory_space<vmem>>, %arg3: memref<16x512xf32, #tpu.memory_space<vmem>>, %arg4: memref<4x512xf32, #tpu.memory_space<vmem>>, %arg5: memref<2xf32, #tpu.memory_space<smem>>, %arg6: memref<16x512xf32, #tpu.memory_space<vmem>>, %arg7: memref<16x1xf32, #tpu.memory_space<vmem>>) attributes {dimension_semantics = [#tpu.dimension_semantics<parallel>], iteration_bounds = array<i64: 1>, scalar_prefetch = 0 : i64, scratch_operands = 0 : i64, tpu.core_type = #tpu.core_type<tc>, window_params = [{transform_indices = @transform_0, window_bounds = array<i64: 16, 512>}, {transform_indices = @transform_1, window_bounds = array<i64: 16, 512>}, {transform_indices = @transform_2, window_bounds = array<i64: 16, 512>}, {pipeline_mode = #tpu.pipeline_mode<synchronous>, transform_indices = @transform_3, window_bounds = array<i64: 4, 512>}, {transform_indices = @transform_4, window_bounds = array<i64: 2>}, {transform_indices = @transform_5, window_bounds = array<i64: 16, 512>}, {transform_indices = @transform_6, window_bounds = array<i64: 16, 1>}]} {
    %c0 = arith.constant 0 : index
    %c0_0 = arith.constant 0 : index
    %0 = vector.load %arg1[%c0, %c0_0] : memref<16x512xf32, #tpu.memory_space<vmem>>, vector<16x512xf32>
    %c0_1 = arith.constant 0 : index
    %c0_2 = arith.constant 0 : index
    %1 = vector.load %arg2[%c0_1, %c0_2] : memref<16x512xf32, #tpu.memory_space<vmem>>, vector<16x512xf32>
    %c0_3 = arith.constant 0 : index
    %c0_4 = arith.constant 0 : index
    %2 = vector.load %arg3[%c0_3, %c0_4] : memref<16x512xf32, #tpu.memory_space<vmem>>, vector<16x512xf32>
    %c0_5 = arith.constant 0 : index
    %c0_6 = arith.constant 0 : index
    %3 = vector.load %arg4[%c0_5, %c0_6] : memref<4x512xf32, #tpu.memory_space<vmem>>, vector<1x512xf32>
    %c1 = arith.constant 1 : index
    %c0_7 = arith.constant 0 : index
    %4 = vector.load %arg4[%c1, %c0_7] : memref<4x512xf32, #tpu.memory_space<vmem>>, vector<1x512xf32>
    %c2 = arith.constant 2 : index
    %c0_8 = arith.constant 0 : index
    %5 = vector.load %arg4[%c2, %c0_8] : memref<4x512xf32, #tpu.memory_space<vmem>>, vector<1x512xf32>
    %c3 = arith.constant 3 : index
    %c0_9 = arith.constant 0 : index
    %6 = vector.load %arg4[%c3, %c0_9] : memref<4x512xf32, #tpu.memory_space<vmem>>, vector<1x512xf32>
    %c0_10 = arith.constant 0 : index
    %7 = memref.load %arg5[%c0_10] : memref<2xf32, #tpu.memory_space<smem>>
    %c1_11 = arith.constant 1 : index
    %8 = memref.load %arg5[%c1_11] : memref<2xf32, #tpu.memory_space<smem>>
    %cst = arith.constant dense<0.000000e+00> : vector<16xf32>
    %9 = vector.multi_reduction <add>, %0, %cst [1] : vector<16x512xf32> to vector<16xf32>
    %10 = vector.shape_cast %9 : vector<16xf32> to vector<16x1xf32>
    %cst_12 = arith.constant 5.120000e+02 : f32
    %11 = vector.broadcast %cst_12 : f32 to vector<16x1xf32>
    %12 = arith.divf %10, %11 : vector<16x1xf32>
    %13 = vector.broadcast %12 : vector<16x1xf32> to vector<16x512xf32>
    %14 = arith.subf %0, %13 : vector<16x512xf32>
    %15 = arith.mulf %14, %14 : vector<16x512xf32>
    %cst_13 = arith.constant dense<0.000000e+00> : vector<16xf32>
    %16 = vector.multi_reduction <add>, %15, %cst_13 [1] : vector<16x512xf32> to vector<16xf32>
    %17 = vector.shape_cast %16 : vector<16xf32> to vector<16x1xf32>
    %cst_14 = arith.constant 5.120000e+02 : f32
    %18 = vector.broadcast %cst_14 : f32 to vector<16x1xf32>
    %19 = arith.divf %17, %18 : vector<16x1xf32>
    %cst_15 = arith.constant 9.99999974E-6 : f32
    %20 = vector.broadcast %cst_15 : f32 to vector<16x1xf32>
    %21 = arith.addf %19, %20 : vector<16x1xf32>
    %22 = math.rsqrt %21 : vector<16x1xf32>
    %23 = vector.broadcast %22 : vector<16x1xf32> to vector<16x512xf32>
    %24 = arith.mulf %14, %23 : vector<16x512xf32>
    %25 = vector.broadcast %3 : vector<1x512xf32> to vector<16x512xf32>
    %26 = arith.mulf %24, %25 : vector<16x512xf32>
    %27 = vector.broadcast %4 : vector<1x512xf32> to vector<16x512xf32>
    %28 = arith.addf %26, %27 : vector<16x512xf32>
    %29 = vector.broadcast %5 : vector<1x512xf32> to vector<16x512xf32>
    %30 = arith.mulf %2, %29 : vector<16x512xf32>
    %cst_16 = arith.constant dense<0.000000e+00> : vector<16xf32>
    %31 = vector.multi_reduction <add>, %30, %cst_16 [1] : vector<16x512xf32> to vector<16xf32>
    %32 = vector.shape_cast %31 : vector<16xf32> to vector<16x1xf32>
    %33 = vector.broadcast %7 : f32 to vector<16x1xf32>
    %34 = arith.addf %32, %33 : vector<16x1xf32>
    %cst_17 = arith.constant dense<0.000000e+00> : vector<16xf32>
    %35 = vector.multi_reduction <add>, %2, %cst_17 [1] : vector<16x512xf32> to vector<16xf32>
    %36 = vector.shape_cast %35 : vector<16xf32> to vector<16x1xf32>
    %37 = arith.mulf %34, %36 : vector<16x1xf32>
    %38 = vector.broadcast %6 : vector<1x512xf32> to vector<16x512xf32>
    %39 = arith.mulf %1, %38 : vector<16x512xf32>
    %cst_18 = arith.constant dense<0.000000e+00> : vector<16xf32>
    %40 = vector.multi_reduction <add>, %39, %cst_18 [1] : vector<16x512xf32> to vector<16xf32>
    %41 = vector.shape_cast %40 : vector<16xf32> to vector<16x1xf32>
    %42 = vector.broadcast %8 : f32 to vector<16x1xf32>
    %43 = arith.addf %41, %42 : vector<16x1xf32>
    %cst_19 = arith.constant dense<0.000000e+00> : vector<16xf32>
    %44 = vector.multi_reduction <add>, %1, %cst_19 [1] : vector<16x512xf32> to vector<16xf32>
    %45 = vector.shape_cast %44 : vector<16xf32> to vector<16x1xf32>
    %46 = arith.mulf %43, %45 : vector<16x1xf32>
    %47 = vector.broadcast %37 : vector<16x1xf32> to vector<16x512xf32>
    %48 = arith.addf %28, %47 : vector<16x512xf32>
    %c0_20 = arith.constant 0 : index
    %c0_21 = arith.constant 0 : index
    %49 = vector.load %arg6[%c0_20, %c0_21] : memref<16x512xf32, #tpu.memory_space<vmem>>, vector<16x512xf32>
    tpu.vector_store %arg6[%c0_20, %c0_21], %48 {strides = array<i32>} : memref<16x512xf32, #tpu.memory_space<vmem>>, vector<16x512xf32>,
    %c0_22 = arith.constant 0 : index
    %c0_23 = arith.constant 0 : index
    %50 = vector.load %arg7[%c0_22, %c0_23] : memref<16x1xf32, #tpu.memory_space<vmem>>, vector<16x1xf32>
    tpu.vector_store %arg7[%c0_22, %c0_23], %46 {strides = array<i32>} : memref<16x1xf32, #tpu.memory_space<vmem>>, vector<16x1xf32>,
    return
  }
  func.func @transform_0(%arg0: i32) -> (i32, i32) {
    %c0_i32 = arith.constant 0 : i32
    %c0_i32_0 = arith.constant 0 : i32
    return %arg0, %c0_i32 : i32, i32
  }
  func.func @transform_1(%arg0: i32) -> (i32, i32) {
    %c0_i32 = arith.constant 0 : i32
    %c0_i32_0 = arith.constant 0 : i32
    return %arg0, %c0_i32 : i32, i32
  }
  func.func @transform_2(%arg0: i32) -> (i32, i32) {
    %c0_i32 = arith.constant 0 : i32
    %c0_i32_0 = arith.constant 0 : i32
    return %arg0, %c0_i32 : i32, i32
  }
  func.func @transform_3(%arg0: i32) -> (i32, i32) {
    %c0_i32 = arith.constant 0 : i32
    %c0_i32_0 = arith.constant 0 : i32
    %c0_i32_1 = arith.constant 0 : i32
    return %c0_i32, %c0_i32_0 : i32, i32
  }
  func.func @transform_4(%arg0: i32) -> i32 {
    %c0_i32 = arith.constant 0 : i32
    %c0_i32_0 = arith.constant 0 : i32
    return %c0_i32 : i32
  }
  func.func @transform_5(%arg0: i32) -> (i32, i32) {
    %c0_i32 = arith.constant 0 : i32
    %c0_i32_0 = arith.constant 0 : i32
    return %arg0, %c0_i32 : i32, i32
  }
  func.func @transform_6(%arg0: i32) -> (i32, i32) {
    %c0_i32 = arith.constant 0 : i32
    %c0_i32_0 = arith.constant 0 : i32
    return %arg0, %c0_i32 : i32, i32
  }
}

</mosaic_0001>

<llo_original>
// kernel: tpu_custom_call.1
$region0: #{tpu_custom_call.1}
  #allocation0 [shape = 'u32[]', space=smem, size = 0x4, offset = 0x4, fixed_abs, tag = 'smem constant byte address 0x4 - core index']
  #allocation1 [shape = 'u32[144,128]{1,0:T(1,128)}', space=vmem, size = 0x12000, scoped, tag = 'internal scratch']
  %s0 = inlined_call_operand.hbm [shape: f32[16,512], index: 0, kind: input, shape index: {}]
  %s1 = inlined_call_operand.hbm [shape: f32[16,512], index: 1, kind: input, shape index: {}]
  %s2 = inlined_call_operand.hbm [shape: f32[16,512], index: 2, kind: input, shape index: {}]
  %s3 = inlined_call_operand.hbm [shape: f32[4,512], index: 3, kind: input, shape index: {}]
  %s4 = inlined_call_operand.vmem [shape: f32[2], index: 4, kind: input, shape index: {}]
  %s5 = inlined_call_operand.hbm [shape: f32[16,512], index: 5, kind: output, shape index: {0}]
  %s6 = inlined_call_operand.vmem [shape: f32[16,1], index: 6, kind: output, shape index: {1}]
  %7 = xla_tuple %s5, %s6
  %s8 = sld [smem:[#allocation0]]
  $region58: #{tpu_custom_call.1} parent=0
    _
  %s10 = ssub.s32 1, %s8
  %s11 = scalar_select 0, %s10, %s8
  $region1: #{tpu_custom_call.1} parent=0
    #allocation2 [shape = 'u8[32768]{0}', space=vmem, size = 0x8000, scoped, tag = 'input window, operand 0, single buffered']
    #allocation3 [shape = 's32[1]{0}', space=sflag, size = 0x4, scoped, tag = 'scoped memory for tpu_custom_call.1']
    #allocation4 [shape = 's32[1]{0}', space=sflag, size = 0x4, scoped, tag = 'scoped memory for tpu_custom_call.1']
    #allocation5 [shape = 's32[1]{0}', space=sflag, size = 0x4, scoped, tag = 'scoped memory for tpu_custom_call.1']
    #allocation6 [shape = 'u8[32768]{0}', space=vmem, size = 0x8000, scoped, tag = 'input window, operand 1, single buffered']
    #allocation7 [shape = 's32[1]{0}', space=sflag, size = 0x4, scoped, tag = 'scoped memory for tpu_custom_call.1']
    #allocation8 [shape = 'u8[32768]{0}', space=vmem, size = 0x8000, scoped, tag = 'input window, operand 2, single buffered']
    #allocation9 [shape = 'u8[8192]{0}', space=vmem, size = 0x2000, scoped, tag = 'input window, operand 3, single buffered']
    #allocation10 [shape = 's32[1]{0}', space=sflag, size = 0x4, scoped, tag = 'scoped memory for tpu_custom_call.1']
    #allocation11 [shape = 'u8[512]{0}', space=smem, size = 0x200, scoped, tag = 'input window, operand 4, single buffered']
    #allocation12 [shape = 'u8[32768]{0}', space=vmem, size = 0x8000, scoped, tag = 'output window, operand 0, single buffered']
    %12 = vsyncpa [#allocation3], 0
    %13 = vsyncpa [#allocation7], 0
    %14 = vsyncpa [#allocation10], 0
    %15 = vsyncpa [#allocation5], 0
    %16 = vsyncpa [#allocation4], 0
    // Predicated region
    $region2: #{tpu_custom_call.1} parent=1 // pred_check
      _
    $region3: #{tpu_custom_call.1} parent=1 // pred_check_branch
      %18 = sbr.rel (0) target = $region5
    $region4: #{tpu_custom_call.1} parent=1 // pred_region
      %s20 = ssub.s32 1024, 1024
      %21 = vsyncadd [#allocation3], %s20
      %s22 = sshll.u32 [#allocation2], 4
      %s23 = int_to_ptr.vmem [resolvable:$true] %s22
      %28 = dma.hbm_to_vmem [thread:$0]  %s0, 1024, %s23, [#allocation3], 512, 512, 32
    $region5: #{tpu_custom_call.1} parent=1 // pred_fallthru
      _
    // Predicated region
    $region6: #{tpu_custom_call.1} parent=1 // pred_check
      _
    $region7: #{tpu_custom_call.1} parent=1 // pred_check_branch
      %30 = sbr.rel (0) target = $region9
    $region8: #{tpu_custom_call.1} parent=1 // pred_region
      %s32 = ssub.s32 1024, 1024
      %33 = vsyncadd [#allocation7], %s32
      %s34 = sshll.u32 [#allocation6], 4
      %s35 = int_to_ptr.vmem [resolvable:$true] %s34
      %40 = dma.hbm_to_vmem [thread:$0]  %s1, 1024, %s35, [#allocation7], 512, 512, 32
    $region9: #{tpu_custom_call.1} parent=1 // pred_fallthru
      _
    // Predicated region
    $region10: #{tpu_custom_call.1} parent=1 // pred_check
      _
    $region11: #{tpu_custom_call.1} parent=1 // pred_check_branch
      %42 = sbr.rel (0) target = $region13
    $region12: #{tpu_custom_call.1} parent=1 // pred_region
      %s44 = ssub.s32 1024, 1024
      %45 = vsyncadd [#allocation7], %s44
      %s46 = sshll.u32 [#allocation8], 4
      %s47 = int_to_ptr.vmem [resolvable:$true] %s46
      %52 = dma.hbm_to_vmem [thread:$0]  %s2, 1024, %s47, [#allocation7], 512, 512, 32
    $region13: #{tpu_custom_call.1} parent=1 // pred_fallthru
      _
    // Predicated region
    $region14: #{tpu_custom_call.1} parent=1 // pred_check
      _
    $region15: #{tpu_custom_call.1} parent=1 // pred_check_branch
      %54 = sbr.rel (0) target = $region17
    $region16: #{tpu_custom_call.1} parent=1 // pred_region
      %s56 = ssub.s32 256, 256
      %57 = vsyncadd [#allocation10], %s56
      %s59 = sshll.u32 [#allocation9], 4
      %s60 = int_to_ptr.vmem [resolvable:$true] %s59
      %62 = dma.hbm_to_vmem [thread:$0]  %s3, 256, %s60, [#allocation10]
    $region17: #{tpu_custom_call.1} parent=1 // pred_fallthru
      _
    // Predicated region
    $region18: #{tpu_custom_call.1} parent=1 // pred_check
      _
    $region19: #{tpu_custom_call.1} parent=1 // pred_check_branch
      %64 = sbr.rel (0) target = $region21
    $region20: #{tpu_custom_call.1} parent=1 // pred_region
      %s66 = ssub.s32 16, 16
      %67 = vsyncadd [#allocation5], %s66
      %s69 = sshll.u32 %s4, 4
      %s70 = int_to_ptr.vmem [resolvable:$true] %s69
      %72 = dma.vmem_to_smem %s70, 16, [#allocation11], [#allocation5]
    $region21: #{tpu_custom_call.1} parent=1 // pred_fallthru
      _
    // Predicated region
    $region22: #{tpu_custom_call.1} parent=1 // pred_check
      _
    $region23: #{tpu_custom_call.1} parent=1 // pred_check_branch
      %74 = sbr.rel (0) target = $region25
    $region24: #{tpu_custom_call.1} parent=1 // pred_region
      %75 = dma.done [#allocation3], 1024
    $region25: #{tpu_custom_call.1} parent=1 // pred_fallthru
      _
    // Predicated region
    $region26: #{tpu_custom_call.1} parent=1 // pred_check
      _
    $region27: #{tpu_custom_call.1} parent=1 // pred_check_branch
      %77 = sbr.rel (0) target = $region29
    $region28: #{tpu_custom_call.1} parent=1 // pred_region
      %78 = dma.done [#allocation7], 1024
    $region29: #{tpu_custom_call.1} parent=1 // pred_fallthru
      _
    // Predicated region
    $region30: #{tpu_custom_call.1} parent=1 // pred_check
      _
    $region31: #{tpu_custom_call.1} parent=1 // pred_check_branch
      %80 = sbr.rel (0) target = $region33
    $region32: #{tpu_custom_call.1} parent=1 // pred_region
      %81 = dma.done [#allocation7], 1024
    $region33: #{tpu_custom_call.1} parent=1 // pred_fallthru
      _
    // Predicated region
    $region34: #{tpu_custom_call.1} parent=1 // pred_check
      _
    $region35: #{tpu_custom_call.1} parent=1 // pred_check_branch
      %83 = sbr.rel (0) target = $region37
    $region36: #{tpu_custom_call.1} parent=1 // pred_region
      %84 = dma.done [#allocation10], 256
    $region37: #{tpu_custom_call.1} parent=1 // pred_fallthru
      _
    // Predicated region
    $region38: #{tpu_custom_call.1} parent=1 // pred_check
      _
    $region39: #{tpu_custom_call.1} parent=1 // pred_check_branch
      %86 = sbr.rel (0) target = $region41
    $region40: #{tpu_custom_call.1} parent=1 // pred_region
      %87 = dma.done [#allocation5], 16
    $region41: #{tpu_custom_call.1} parent=1 // pred_fallthru
      _
    %88 = sfence
    %v89 = vld [vmem:[#allocation2] sm:$0xff]
    %v90 = vld [vmem:[#allocation2 + $0x8] sm:$0xff]
    %v91 = vld [vmem:[#allocation2 + $0x10] sm:$0xff]
    %v92 = vld [vmem:[#allocation2 + $0x18] sm:$0xff]
    %v93 = vld [vmem:[#allocation2 + $0x20] sm:$0xff]
    %v94 = vld [vmem:[#allocation2 + $0x28] sm:$0xff]
    %v95 = vld [vmem:[#allocation2 + $0x30] sm:$0xff]
    %v96 = vld [vmem:[#allocation2 + $0x38] sm:$0xff]
    %v97 = vld [vmem:[#allocation6] sm:$0xff]
    %v98 = vld [vmem:[#allocation6 + $0x8] sm:$0xff]
    %v99 = vld [vmem:[#allocation6 + $0x10] sm:$0xff]
    %v100 = vld [vmem:[#allocation6 + $0x18] sm:$0xff]
    %v101 = vld [vmem:[#allocation6 + $0x20] sm:$0xff]
    %v102 = vld [vmem:[#allocation6 + $0x28] sm:$0xff]
    %v103 = vld [vmem:[#allocation6 + $0x30] sm:$0xff]
    %v104 = vld [vmem:[#allocation6 + $0x38] sm:$0xff]
    %v105 = vld [vmem:[#allocation8] sm:$0xff]
    %v106 = vld [vmem:[#allocation8 + $0x8] sm:$0xff]
    %v107 = vld [vmem:[#allocation8 + $0x10] sm:$0xff]
    %v108 = vld [vmem:[#allocation8 + $0x18] sm:$0xff]
    %v109 = vld [vmem:[#allocation8 + $0x20] sm:$0xff]
    %v110 = vld [vmem:[#allocation8 + $0x28] sm:$0xff]
    %v111 = vld [vmem:[#allocation8 + $0x30] sm:$0xff]
    %v112 = vld [vmem:[#allocation8 + $0x38] sm:$0xff]
    %v113 = vld [vmem:[#allocation9] ss:$4 sm:$0xf]
    %s114 = scalar_lea.vmem [#allocation9], 1
    %v115 = vld [vmem:[%s114] ss:$4 sm:$0xf]
    %s116 = scalar_lea.vmem [#allocation9], 2
    %v117 = vld [vmem:[%s116] ss:$4 sm:$0xf]
    %s118 = scalar_lea.vmem [#allocation9], 3
    %v119 = vld [vmem:[%s118] ss:$4 sm:$0xf]
    %s120 = sld [smem:[#allocation11]]
    %s121 = sld [smem:[#allocation11 + $0x1]]
    %v122 = vadd.f32 %v89, %v90
    %v123 = vadd.f32 %v122, %v91
    %v124 = vadd.f32 %v123, %v92
    %125 = vadd.xlane.f32.xlu0 %v124
    %v126 = vpop.xlane.xlu0 %125
    %v127 = vadd.f32 %v93, %v94
    %v128 = vadd.f32 %v127, %v95
    %v129 = vadd.f32 %v128, %v96
    %130 = vadd.xlane.f32.xlu0 %v129
    %v131 = vpop.xlane.xlu0 %130
    %v132 = vrcp.pop 512.0
    %v133 = vmul.f32 %v126, %v132
    %v134 = vmul.f32 %v131, %v132
    %v135 = vsub.f32 %v89, %v133
    %v136 = vsub.f32 %v90, %v133
    %v137 = vsub.f32 %v91, %v133
    %v138 = vsub.f32 %v92, %v133
    %v139 = vsub.f32 %v93, %v134
    %v140 = vsub.f32 %v94, %v134
    %v141 = vsub.f32 %v95, %v134
    %v142 = vsub.f32 %v96, %v134
    %v143 = vmul.f32 %v135, %v135
    %v144 = vmul.f32 %v136, %v136
    %v145 = vmul.f32 %v137, %v137
    %v146 = vmul.f32 %v138, %v138
    %v147 = vmul.f32 %v139, %v139
    %v148 = vmul.f32 %v140, %v140
    %v149 = vmul.f32 %v141, %v141
    %v150 = vmul.f32 %v142, %v142
    %v151 = vadd.f32 %v143, %v144
    %v152 = vadd.f32 %v151, %v145
    %v153 = vadd.f32 %v152, %v146
    %154 = vadd.xlane.f32.xlu0 %v153
    %v155 = vpop.xlane.xlu0 %154
    %v156 = vadd.f32 %v147, %v148
    %v157 = vadd.f32 %v156, %v149
    %v158 = vadd.f32 %v157, %v150
    %159 = vadd.xlane.f32.xlu0 %v158
    %v160 = vpop.xlane.xlu0 %159
    %v161 = vmul.f32 %v155, %v132
    %v162 = vmul.f32 %v160, %v132
    %v163 = vadd.f32 %v161, 1e-05
    %v164 = vadd.f32 %v162, 1e-05
    %v165 = vrsqrt.pop %v163
    %v166 = vrsqrt.pop %v164
    %v167 = vmul.f32 %v135, %v165
    %v168 = vmul.f32 %v136, %v165
    %v169 = vmul.f32 %v137, %v165
    %v170 = vmul.f32 %v138, %v165
    %v171 = vmul.f32 %v139, %v166
    %v172 = vmul.f32 %v140, %v166
    %v173 = vmul.f32 %v141, %v166
    %v174 = vmul.f32 %v142, %v166
    %v176 = vlaneseq
    %v177 = vshrl.u32 %v176, 7
    %v178 = vsub.s32 0, %v177
    %v179 = vrot.slane %v113, %v178
    %v180 = vlaneseq
    %v181 = vshrl.u32 %v180, 7
    %v182 = vsub.s32 1, %v181
    %v183 = vrot.slane %v113, %v182
    %v184 = vlaneseq
    %v185 = vshrl.u32 %v184, 7
    %v186 = vsub.s32 2, %v185
    %v187 = vrot.slane %v113, %v186
    %v188 = vlaneseq
    %v189 = vshrl.u32 %v188, 7
    %v190 = vsub.s32 3, %v189
    %v191 = vrot.slane %v113, %v190
    %v196 = vmul.f32 %v167, %v179
    %v197 = vmul.f32 %v168, %v183
    %v198 = vmul.f32 %v169, %v187
    %v199 = vmul.f32 %v170, %v191
    %v200 = vmul.f32 %v171, %v179
    %v201 = vmul.f32 %v172, %v183
    %v202 = vmul.f32 %v173, %v187
    %v203 = vmul.f32 %v174, %v191
    %v205 = vlaneseq
    %v206 = vshrl.u32 %v205, 7
    %v207 = vsub.s32 0, %v206
    %v208 = vrot.slane %v115, %v207
    %v209 = vlaneseq
    %v210 = vshrl.u32 %v209, 7
    %v211 = vsub.s32 1, %v210
    %v212 = vrot.slane %v115, %v211
    %v213 = vlaneseq
    %v214 = vshrl.u32 %v213, 7
    %v215 = vsub.s32 2, %v214
    %v216 = vrot.slane %v115, %v215
    %v217 = vlaneseq
    %v218 = vshrl.u32 %v217, 7
    %v219 = vsub.s32 3, %v218
    %v220 = vrot.slane %v115, %v219
    %v225 = vadd.f32 %v196, %v208
    %v226 = vadd.f32 %v197, %v212
    %v227 = vadd.f32 %v198, %v216
    %v228 = vadd.f32 %v199, %v220
    %v229 = vadd.f32 %v200, %v208
    %v230 = vadd.f32 %v201, %v212
    %v231 = vadd.f32 %v202, %v216
    %v232 = vadd.f32 %v203, %v220
    %v234 = vlaneseq
    %v235 = vshrl.u32 %v234, 7
    %v236 = vsub.s32 0, %v235
    %v237 = vrot.slane %v117, %v236
    %v238 = vlaneseq
    %v239 = vshrl.u32 %v238, 7
    %v240 = vsub.s32 1, %v239
    %v241 = vrot.slane %v117, %v240
    %v242 = vlaneseq
    %v243 = vshrl.u32 %v242, 7
    %v244 = vsub.s32 2, %v243
    %v245 = vrot.slane %v117, %v244
    %v246 = vlaneseq
    %v247 = vshrl.u32 %v246, 7
    %v248 = vsub.s32 3, %v247
    %v249 = vrot.slane %v117, %v248
    %v254 = vmul.f32 %v105, %v237
    %v255 = vmul.f32 %v106, %v241
    %v256 = vmul.f32 %v107, %v245
    %v257 = vmul.f32 %v108, %v249
    %v258 = vmul.f32 %v109, %v237
    %v259 = vmul.f32 %v110, %v241
    %v260 = vmul.f32 %v111, %v245
    %v261 = vmul.f32 %v112, %v249
    %v262 = vadd.f32 %v254, %v255
    %v263 = vadd.f32 %v262, %v256
    %v264 = vadd.f32 %v263, %v257
    %265 = vadd.xlane.f32.xlu0 %v264
    %v266 = vpop.xlane.xlu0 %265
    %v267 = vadd.f32 %v258, %v259
    %v268 = vadd.f32 %v267, %v260
    %v269 = vadd.f32 %v268, %v261
    %270 = vadd.xlane.f32.xlu0 %v269
    %v271 = vpop.xlane.xlu0 %270
    %v272 = vstv %s120
    %v273 = vadd.f32 %v266, %v272
    %v274 = vadd.f32 %v271, %v272
    %v275 = vadd.f32 %v105, %v106
    %v276 = vadd.f32 %v275, %v107
    %v277 = vadd.f32 %v276, %v108
    %278 = vadd.xlane.f32.xlu0 %v277
    %v279 = vpop.xlane.xlu0 %278
    %v280 = vadd.f32 %v109, %v110
    %v281 = vadd.f32 %v280, %v111
    %v282 = vadd.f32 %v281, %v112
    %283 = vadd.xlane.f32.xlu0 %v282
    %v284 = vpop.xlane.xlu0 %283
    %v285 = vmul.f32 %v273, %v279
    %v286 = vmul.f32 %v274, %v284
    %v288 = vlaneseq
    %v289 = vshrl.u32 %v288, 7
    %v290 = vsub.s32 0, %v289
    %v291 = vrot.slane %v119, %v290
    %v292 = vlaneseq
    %v293 = vshrl.u32 %v292, 7
    %v294 = vsub.s32 1, %v293
    %v295 = vrot.slane %v119, %v294
    %v296 = vlaneseq
    %v297 = vshrl.u32 %v296, 7
    %v298 = vsub.s32 2, %v297
    %v299 = vrot.slane %v119, %v298
    %v300 = vlaneseq
    %v301 = vshrl.u32 %v300, 7
    %v302 = vsub.s32 3, %v301
    %v303 = vrot.slane %v119, %v302
    %v308 = vmul.f32 %v97, %v291
    %v309 = vmul.f32 %v98, %v295
    %v310 = vmul.f32 %v99, %v299
    %v311 = vmul.f32 %v100, %v303
    %v312 = vmul.f32 %v101, %v291
    %v313 = vmul.f32 %v102, %v295
    %v314 = vmul.f32 %v103, %v299
    %v315 = vmul.f32 %v104, %v303
    %v316 = vadd.f32 %v308, %v309
    %v317 = vadd.f32 %v316, %v310
    %v318 = vadd.f32 %v317, %v311
    %319 = vadd.xlane.f32.xlu0 %v318
    %v320 = vpop.xlane.xlu0 %319
    %v321 = vadd.f32 %v312, %v313
    %v322 = vadd.f32 %v321, %v314
    %v323 = vadd.f32 %v322, %v315
    %324 = vadd.xlane.f32.xlu0 %v323
    %v325 = vpop.xlane.xlu0 %324
    %v326 = vstv %s121
    %v327 = vadd.f32 %v320, %v326
    %v328 = vadd.f32 %v325, %v326
    %v329 = vadd.f32 %v97, %v98
    %v330 = vadd.f32 %v329, %v99
    %v331 = vadd.f32 %v330, %v100
    %332 = vadd.xlane.f32.xlu0 %v331
    %v333 = vpop.xlane.xlu0 %332
    %v334 = vadd.f32 %v101, %v102
    %v335 = vadd.f32 %v334, %v103
    %v336 = vadd.f32 %v335, %v104
    %337 = vadd.xlane.f32.xlu0 %v336
    %v338 = vpop.xlane.xlu0 %337
    %v339 = vmul.f32 %v327, %v333
    %v340 = vmul.f32 %v328, %v338
    %v341 = vadd.f32 %v225, %v285
    %v342 = vadd.f32 %v226, %v285
    %v343 = vadd.f32 %v227, %v285
    %v344 = vadd.f32 %v228, %v285
    %v345 = vadd.f32 %v229, %v286
    %v346 = vadd.f32 %v230, %v286
    %v347 = vadd.f32 %v231, %v286
    %v348 = vadd.f32 %v232, %v286
    %349 = vst [vmem:[#allocation12] sm:$0xff] %v341
    %350 = vst [vmem:[#allocation12 + $0x8] sm:$0xff] %v342
    %351 = vst [vmem:[#allocation12 + $0x10] sm:$0xff] %v343
    %352 = vst [vmem:[#allocation12 + $0x18] sm:$0xff] %v344
    %353 = vst [vmem:[#allocation12 + $0x20] sm:$0xff] %v345
    %354 = vst [vmem:[#allocation12 + $0x28] sm:$0xff] %v346
    %355 = vst [vmem:[#allocation12 + $0x30] sm:$0xff] %v347
    %356 = vst [vmem:[#allocation12 + $0x38] sm:$0xff] %v348
    %vm357 = vcmask 7168
    %358 = vst.msk [vmem:[%s6] sm:$0xff] %vm357, %v339
    %359 = vst.msk [vmem:[%s6 + $0x8] sm:$0xff] %vm357, %v340
    // Predicated region
    $region42: #{tpu_custom_call.1} parent=1 // pred_check
      _
    $region43: #{tpu_custom_call.1} parent=1 // pred_check_branch
      %361 = sbr.rel (0) target = $region45
    $region44: #{tpu_custom_call.1} parent=1 // pred_region
      %s363 = ssub.s32 1024, 1024
      %364 = vsyncadd [#allocation4], %s363
      %s365 = sshll.u32 [#allocation12], 4
      %s366 = int_to_ptr.vmem [resolvable:$true] %s365
      %371 = dma.vmem_to_hbm [thread:$0]  %s366, 1024, %s5, [#allocation4], 512, 512, 32
    $region45: #{tpu_custom_call.1} parent=1 // pred_fallthru
      _
    // Predicated region
    $region46: #{tpu_custom_call.1} parent=1 // pred_check
      _
    $region47: #{tpu_custom_call.1} parent=1 // pred_check_branch
      %373 = sbr.rel (0) target = $region49
    $region48: #{tpu_custom_call.1} parent=1 // pred_region
      _
    $region49: #{tpu_custom_call.1} parent=1 // pred_fallthru
      _
    // Predicated region
    $region50: #{tpu_custom_call.1} parent=1 // pred_check
      _
    $region51: #{tpu_custom_call.1} parent=1 // pred_check_branch
      %375 = sbr.rel (0) target = $region53
    $region52: #{tpu_custom_call.1} parent=1 // pred_region
      %376 = dma.done [#allocation4], 1024
    $region53: #{tpu_custom_call.1} parent=1 // pred_fallthru
      _
    // Predicated region
    $region54: #{tpu_custom_call.1} parent=1 // pred_check
      _
    $region55: #{tpu_custom_call.1} parent=1 // pred_check_branch
      %378 = sbr.rel (0) target = $region57
    $region56: #{tpu_custom_call.1} parent=1 // pred_region
      _
    $region57: #{tpu_custom_call.1} parent=1 // pred_fallthru
      _
    %379 = vsyncpa [#allocation3], 1
    %380 = vsyncpa [#allocation7], 1
    %381 = vsyncpa [#allocation10], 1
    %382 = vsyncpa [#allocation4], 1
    %383 = vsyncpa [#allocation5], 1

</llo_original>
